<compile_context>
chip_gen: v7x
topology: tpu7x:2x2x1
jax: 0.10.0
libtpu: 0.0.40
codegen_flags: <defaults>
</compile_context>

<pallas_src>
import functools

import jax
import jax.numpy as jnp
from jax.experimental import pallas as pl
from jax.experimental.pallas import tpu as pltpu


def _cdiv(a: int, b: int) -> int:
    return -(-a // b)


def kickback_get_signs_for_length(length: int) -> jnp.ndarray:
    # Reference-only helper (the kernel builds the sign row in-VMEM via iota).
    idx = jnp.arange(length)
    return jnp.where(idx < length // 2, 1.0, -1.0).astype(jnp.float32)


def _pnrelu_kernel(x_ref, o_ref, *, half: int, tile_c: int):
    x = x_ref[...]
    # (1, tile_c) sign row: +1 where global channel < half, else -1.  Built on a single
    # sublane row (cheap), then broadcast over the sublane axis by the multiply.
    c_off = pl.program_id(1) * tile_c
    lane = jax.lax.broadcasted_iota(jnp.int32, (1, tile_c), 1) + c_off
    sign = jnp.where(lane < half, 1.0, -1.0).astype(x.dtype)
    o_ref[...] = jnp.maximum(x, jnp.zeros((), x.dtype)) * sign


def _choose_tiles(n: int, c: int, dtype, target_bytes: int = 4 << 20):
    """Pick (tile_n, tile_c): ~4 MiB blocks, lane-dense C, dtype-native sublane rows."""
    itemsize = jnp.dtype(dtype).itemsize
    sub = max(8, 32 // itemsize)  # native sublane packing: 8 f32, 16 bf16, 32 int8/fp8

    # Lane (C) tile: keep full C unless even `sub` rows of it exceed the block target.
    if c <= 128 or c * sub * itemsize <= target_bytes:
        tile_c = c
    else:
        tile_c = max(128, ((target_bytes // (sub * itemsize)) // 128) * 128)
        tile_c = min(tile_c, c)

    # Sublane (N) tile: multiple of `sub` (or full N when N is tiny), ~target per block.
    if n <= sub:
        tile_n = n
    else:
        tile_n = max(sub, ((target_bytes // max(1, tile_c * itemsize)) // sub) * sub)
        tile_n = min(tile_n, max(sub, (n // sub) * sub))

    # Ensure >=2 grid steps when the problem permits, so pipelining kicks in and v7x
    # can shard the "parallel" axes across its 2 TensorCores.
    if _cdiv(n, tile_n) * _cdiv(c, tile_c) < 2:
        if n >= 2 * sub:
            tile_n = max(sub, ((n // 2) // sub) * sub)
        elif c >= 256:
            tile_c = max(128, ((_cdiv(c, 2)) // 128) * 128)

    return tile_n, tile_c


def pnrelu(x: jnp.ndarray) -> jnp.ndarray:
    assert x.ndim == 2, "PNReLU kernel expects (N, C) input (see layout comment)"
    n, c = x.shape
    half = c // 2
    itemsize = jnp.dtype(x.dtype).itemsize
    tile_n, tile_c = _choose_tiles(n, c, x.dtype)
    grid = (_cdiv(n, tile_n), _cdiv(c, tile_c))

    return pl.pallas_call(
        functools.partial(_pnrelu_kernel, half=half, tile_c=tile_c),
        out_shape=jax.ShapeDtypeStruct((n, c), x.dtype),
        grid=grid,
        in_specs=[pl.BlockSpec((tile_n, tile_c), lambda i, j: (i, j))],
        out_specs=pl.BlockSpec((tile_n, tile_c), lambda i, j: (i, j)),
        compiler_params=pltpu.CompilerParams(
            dimension_semantics=("parallel", "parallel"),
            vmem_limit_bytes=48 << 20,
        ),
        cost_estimate=pl.CostEstimate(
            flops=2 * n * c,
            transcendentals=0,
            bytes_accessed=2 * n * c * itemsize,
        ),
    )(x)


def _reference(x: jnp.ndarray) -> jnp.ndarray:
    signs = kickback_get_signs_for_length(x.shape[1]).astype(x.dtype)
    return jnp.maximum(x, 0.0).astype(x.dtype) * signs[None, :]


if __name__ == "__main__":
    root = jax.random.PRNGKey(0)
    k1, k2, k3 = jax.random.split(root, 3)

    # Small 2-D input consistent with the forward: batch=8, channels=128.
    x1 = jax.random.normal(k1, (8, 128), dtype=jnp.float32)
    out1 = jax.block_until_ready(pnrelu(x1))
    assert jnp.allclose(out1, _reference(x1), atol=1e-6), "mismatch (8, 128) f32"

    # Multi-step grid with a partial last row tile (odd N).
    x2 = jax.random.normal(k2, (20, 256), dtype=jnp.float32)
    out2 = jax.block_until_ready(pnrelu(x2))
    assert jnp.allclose(out2, _reference(x2), atol=1e-6), "mismatch (20, 256) f32"

    # bf16: exercises the 16-row native sublane packing and the >=2-step grid split.
    x3 = jax.random.normal(k3, (32, 256), dtype=jnp.bfloat16)
    out3 = jax.block_until_ready(pnrelu(x3))
    assert jnp.array_equal(out3, _reference(x3)), "mismatch (32, 256) bf16"

    print("KERNEL_OK")
</pallas_src>

<mosaic_0001>
module attributes {stable_mosaic.version = 11 : i64} {
  func.func @_pnrelu_kernel(%arg0: i32, %arg1: i32, %arg2: memref<8x128xf32, #tpu.memory_space<vmem>>, %arg3: memref<8x128xf32, #tpu.memory_space<vmem>>) attributes {dimension_semantics = [#tpu.dimension_semantics<parallel>, #tpu.dimension_semantics<parallel>], iteration_bounds = array<i64: 1, 1>, scalar_prefetch = 0 : i64, scratch_operands = 0 : i64, tpu.core_type = #tpu.core_type<tc>, window_params = [{transform_indices = @transform_0, window_bounds = array<i64: 8, 128>}, {transform_indices = @transform_1, window_bounds = array<i64: 8, 128>}]} {
    %c0 = arith.constant 0 : index
    %c0_0 = arith.constant 0 : index
    %0 = vector.load %arg2[%c0, %c0_0] : memref<8x128xf32, #tpu.memory_space<vmem>>, vector<8x128xf32>
    %c128_i32 = arith.constant 128 : i32
    %1 = arith.muli %arg1, %c128_i32 : i32
    %2 = tpu.iota {dimensions = array<i32: 1>} : vector<1x128xi32>
    %3 = vector.broadcast %1 : i32 to vector<1x128xi32>
    %4 = arith.addi %2, %3 : vector<1x128xi32>
    %c64_i32 = arith.constant 64 : i32
    %5 = vector.broadcast %c64_i32 : i32 to vector<1x128xi32>
    %6 = arith.cmpi slt, %4, %5 : vector<1x128xi32>
    %cst = arith.constant 1.000000e+00 : f32
    %cst_1 = arith.constant -1.000000e+00 : f32
    %7 = vector.broadcast %cst : f32 to vector<1x128xf32>
    %8 = vector.broadcast %cst_1 : f32 to vector<1x128xf32>
    %9 = arith.select %6, %7, %8 : vector<1x128xi1>, vector<1x128xf32>
    %cst_2 = arith.constant 0.000000e+00 : f32
    %10 = vector.broadcast %cst_2 : f32 to vector<8x128xf32>
    %11 = arith.maximumf %0, %10 : vector<8x128xf32>
    %12 = vector.broadcast %9 : vector<1x128xf32> to vector<8x128xf32>
    %13 = arith.mulf %11, %12 : vector<8x128xf32>
    %c0_3 = arith.constant 0 : index
    %c0_4 = arith.constant 0 : index
    %14 = vector.load %arg3[%c0_3, %c0_4] : memref<8x128xf32, #tpu.memory_space<vmem>>, vector<8x128xf32>
    tpu.vector_store %arg3[%c0_3, %c0_4], %13 {strides = array<i32>} : memref<8x128xf32, #tpu.memory_space<vmem>>, vector<8x128xf32>,
    return
  }
  func.func @transform_0(%arg0: i32, %arg1: i32) -> (i32, i32) {
    %c0_i32 = arith.constant 0 : i32
    return %arg0, %arg1 : i32, i32
  }
  func.func @transform_1(%arg0: i32, %arg1: i32) -> (i32, i32) {
    %c0_i32 = arith.constant 0 : i32
    return %arg0, %arg1 : i32, i32
  }
}

</mosaic_0001>

<llo_original>
// kernel: tpu_custom_call.1
$region0: #{tpu_custom_call.1}
  #allocation0 [shape = 'u32[]', space=smem, size = 0x4, offset = 0x4, fixed_abs, tag = 'smem constant byte address 0x4 - core index']
  #allocation1 [shape = 'u32[144,128]{1,0:T(1,128)}', space=vmem, size = 0x12000, scoped, tag = 'internal scratch']
  %s0 = inlined_call_operand.hbm [shape: f32[8,128], index: 0, kind: input, shape index: {}]
  %s1 = inlined_call_operand.hbm [shape: f32[8,128], index: 1, kind: output, shape index: {}]
  %s2 = sld [smem:[#allocation0]]
  $region18: #{tpu_custom_call.1} parent=0
    _
  %s4 = ssub.s32 1, %s2
  %s5 = scalar_select 0, %s4, %s2
  $region1: #{tpu_custom_call.1} parent=0
    #allocation2 [shape = 'u8[4096]{0}', space=vmem, size = 0x1000, scoped, tag = 'input window, operand 0, single buffered']
    #allocation3 [shape = 's32[1]{0}', space=sflag, size = 0x4, scoped, tag = 'scoped memory for tpu_custom_call.1']
    #allocation4 [shape = 's32[1]{0}', space=sflag, size = 0x4, scoped, tag = 'scoped memory for tpu_custom_call.1']
    #allocation5 [shape = 'u8[4096]{0}', space=vmem, size = 0x1000, scoped, tag = 'output window, operand 0, single buffered']
    %6 = vsyncpa [#allocation3], 0
    %7 = vsyncpa [#allocation4], 0
    // Predicated region
    $region2: #{tpu_custom_call.1} parent=1 // pred_check
      _
    $region3: #{tpu_custom_call.1} parent=1 // pred_check_branch
      %9 = sbr.rel (0) target = $region5
    $region4: #{tpu_custom_call.1} parent=1 // pred_region
      %s11 = ssub.s32 128, 128
      %12 = vsyncadd [#allocation3], %s11
      %s14 = sshll.u32 [#allocation2], 4
      %s15 = int_to_ptr.vmem [resolvable:$true] %s14
      %17 = dma.hbm_to_vmem [thread:$0]  %s0, 128, %s15, [#allocation3]
    $region5: #{tpu_custom_call.1} parent=1 // pred_fallthru
      _
    // Predicated region
    $region6: #{tpu_custom_call.1} parent=1 // pred_check
      _
    $region7: #{tpu_custom_call.1} parent=1 // pred_check_branch
      %19 = sbr.rel (0) target = $region9
    $region8: #{tpu_custom_call.1} parent=1 // pred_region
      %20 = dma.done [#allocation3], 128
    $region9: #{tpu_custom_call.1} parent=1 // pred_fallthru
      _
    %v21 = vld [vmem:[#allocation2] sm:$0xff]
    %s22 = smul.u32 0, 128
    %v23 = vlaneseq
    %v24 = vand.u32 %v23, 127
    %v25 = vstv %s22
    %v26 = vadd.s32 %v24, %v25
    %vm27 = vcmp.lt.s32.totalorder %v26, 64
    %v28 = vsel %vm27, 1.0, -1.0
    %v29 = vmax.f32 %v21, 0.0
    %v30 = vmul.f32 %v29, %v28
    %31 = vst [vmem:[#allocation5] sm:$0xff] %v30
    // Predicated region
    $region10: #{tpu_custom_call.1} parent=1 // pred_check
      _
    $region11: #{tpu_custom_call.1} parent=1 // pred_check_branch
      %33 = sbr.rel (0) target = $region13
    $region12: #{tpu_custom_call.1} parent=1 // pred_region
      %s35 = ssub.s32 128, 128
      %36 = vsyncadd [#allocation4], %s35
      %s38 = sshll.u32 [#allocation5], 4
      %s39 = int_to_ptr.vmem [resolvable:$true] %s38
      %41 = dma.vmem_to_hbm [thread:$0]  %s39, 128, %s1, [#allocation4]
    $region13: #{tpu_custom_call.1} parent=1 // pred_fallthru
      _
    // Predicated region
    $region14: #{tpu_custom_call.1} parent=1 // pred_check
      _
    $region15: #{tpu_custom_call.1} parent=1 // pred_check_branch
      %43 = sbr.rel (0) target = $region17
    $region16: #{tpu_custom_call.1} parent=1 // pred_region
      %44 = dma.done [#allocation4], 128
    $region17: #{tpu_custom_call.1} parent=1 // pred_fallthru
      _
    %45 = vsyncpa [#allocation3], 1
    %46 = vsyncpa [#allocation4], 1

</llo_original>
